<compile_context>
chip_gen: v7x
topology: tpu7x:2x2x1
jax: 0.10.0
libtpu: 0.0.40
codegen_flags: <defaults>
</compile_context>

<pallas_src>
import jax
import jax.numpy as jnp
from jax.experimental import pallas as pl
from jax.experimental.pallas import tpu as pltpu


# ---------------------------------------------------------------------------
# Tuning constants
# ---------------------------------------------------------------------------
_LANE_CANDIDATES = (2048, 1024, 512, 256, 128)   # lane widths (multiples of 128)
_TILE_BYTES = 8 * 1024 * 1024     # ~8 MiB per VMEM buffer (amortizes ~0.35us/step)
_SPLIT_BYTES = 2 * 1024 * 1024    # above this, force grid >= 2 (v7x: 2 TensorCores)
_VMEM_LIMIT = 48 * 1024 * 1024    # 4 live buffers * 8 MiB + headroom (< v7x 64 MiB)
_PALLAS_MIN_BYTES = 4096          # below this, plain JAX (fuses upstream) is better


# ---------------------------------------------------------------------------
# Kernel: o = -alpha * g   (alpha: f32 scalar in SMEM)
# ---------------------------------------------------------------------------
def _neg_scale_kernel(alpha_ref, g_ref, o_ref):
    neg_alpha = -alpha_ref[0]                       # one sreg op per grid step
    o_ref[...] = (g_ref[...] * neg_alpha).astype(o_ref.dtype)


# ---------------------------------------------------------------------------
# Shape plumbing helpers
# ---------------------------------------------------------------------------
def _pick_lanes(total):
    """Largest lane width (multiple of 128) dividing `total`, preferring rows>=8."""
    fallback = None
    for lanes in _LANE_CANDIDATES:
        if total % lanes == 0:
            if fallback is None:
                fallback = lanes
            if total // lanes >= 8:
                return lanes
    return fallback


def _largest_row_tile(rows, max_tr):
    """Largest tr with: tr % 8 == 0, rows % tr == 0, tr <= max_tr.  None if rows%8."""
    if rows % 8 != 0:
        return None
    m = rows // 8
    cap = max_tr // 8
    if cap < 1:
        return None
    best = 0
    d = 1
    while d * d <= m:
        if m % d == 0:
            for c in (d, m // d):
                if c <= cap and c > best:
                    best = c
        d += 1
    return best * 8 if best else None


def _neg_scale_plain(g, alpha):
    """Plain-JAX fallback (XLA fuses this into the upstream gradient producer)."""
    return (g.astype(jnp.float32) * (-jnp.asarray(alpha, jnp.float32))).astype(g.dtype)


# ---------------------------------------------------------------------------
# Pallas wrapper: gridded, lane-dense, tile-bounded elementwise scale
# ---------------------------------------------------------------------------
def negate_scale(g, alpha):
    """Compute -alpha * g.  Uses the Pallas kernel whenever the shape folds
    to a lane-dense slab and the gradient is big enough to be worth a launch."""
    total = g.size
    if total == 0:
        return g
    itemsize = jnp.dtype(g.dtype).itemsize
    slab_bytes = total * itemsize

    lanes = _pick_lanes(total)
    if lanes is None or slab_bytes < _PALLAS_MIN_BYTES:
        return _neg_scale_plain(g, alpha)

    rows = total // lanes
    g2d = g.reshape(rows, lanes)

    # Rows per tile: big enough to amortize per-step pipeline overhead,
    # bounded so 4 live VMEM buffers (2x in + 2x out) stay well under limits.
    max_tr = max(8, (_TILE_BYTES // (lanes * itemsize)) // 8 * 8)
    if slab_bytes > _SPLIT_BYTES:
        # Keep at least 2 grid steps so v7x's two TensorCores both run.
        max_tr = min(max_tr, max(8, (rows // 2) // 8 * 8))

    tr = _largest_row_tile(rows, max_tr)
    if tr is None:
        # rows not a multiple of 8: only legal tile is the full array.
        if slab_bytes <= _TILE_BYTES:
            tr = rows                       # single full block
        else:
            return _neg_scale_plain(g, alpha)
    elif rows > max_tr and tr * 8 < max_tr:
        # Even division would force tiny tiles; accept one partial last block
        # (masked stores on that step only) to keep tiles large.
        tr = max_tr

    alpha_arr = jnp.asarray(alpha, jnp.float32).reshape((1,))
    grid = (pl.cdiv(rows, tr),)

    out2d = pl.pallas_call(
        _neg_scale_kernel,
        out_shape=jax.ShapeDtypeStruct(g2d.shape, g2d.dtype),
        grid=grid,
        in_specs=[
            pl.BlockSpec(memory_space=pltpu.SMEM),          # alpha scalar
            pl.BlockSpec((tr, lanes), lambda i: (i, 0)),    # grad tile
        ],
        out_specs=pl.BlockSpec((tr, lanes), lambda i: (i, 0)),
        input_output_aliases={1: 0},                        # in-place over g (hint)
        compiler_params=pltpu.CompilerParams(
            dimension_semantics=("parallel",),
            vmem_limit_bytes=_VMEM_LIMIT,
        ),
    )(alpha_arr, g2d)
    return out2d.reshape(g.shape)


# ---------------------------------------------------------------------------
# GradientReversal as a custom_vjp (forward identity, backward -alpha * g)
# ---------------------------------------------------------------------------
@jax.custom_vjp
def gradient_reversal(x, alpha):
    # Mathematical identity: return x untouched (no kernel, no HBM traffic).
    return x


def _grl_fwd(x, alpha):
    return x, alpha


def _grl_bwd(alpha, g):
    gx = negate_scale(g, alpha)
    # No gradient flows to alpha (PyTorch returns None); cotangent must match
    # alpha's aval, so build it from alpha itself.
    return gx, jnp.zeros_like(alpha)


gradient_reversal.defvjp(_grl_fwd, _grl_bwd)


# ---------------------------------------------------------------------------
# Main
# ---------------------------------------------------------------------------
if __name__ == "__main__":
    key = jax.random.PRNGKey(0)
    x = jax.random.normal(key, (2, 4, 16, 16), dtype=jnp.float32)
    alpha = jnp.float32(0.5)

    # Forward: exact identity, no kernel involved.
    y = jax.block_until_ready(gradient_reversal(x, alpha))
    assert y.shape == x.shape and y.dtype == x.dtype
    assert bool(jnp.all(y == x))

    # Backward via VJP with a non-trivial upstream cotangent.
    # The 8 KiB gradient folds to a lane-dense (8, 256) slab -> Pallas kernel.
    g_up = jax.random.normal(jax.random.PRNGKey(1), x.shape, dtype=jnp.float32)
    _, vjp_fn = jax.vjp(lambda a: gradient_reversal(a, alpha), x)
    (gx,) = vjp_fn(g_up)
    gx = jax.block_until_ready(gx)
    assert gx.shape == x.shape and gx.dtype == x.dtype
    assert bool(jnp.allclose(gx, -alpha * g_up, rtol=1e-6, atol=1e-6))

    # grad with all-ones upstream.
    gx1 = jax.grad(lambda a: jnp.sum(gradient_reversal(a, alpha)))(x)
    gx1 = jax.block_until_ready(gx1)
    assert bool(jnp.allclose(gx1, -alpha * jnp.ones_like(x)))

    # Exercise the multi-step grid path (>= 2 blocks, even division) directly
    # on a modest 4 MiB slab.
    big = jax.random.normal(jax.random.PRNGKey(2), (1024, 1024), dtype=jnp.float32)
    out_big = jax.block_until_ready(negate_scale(big, alpha))
    assert bool(jnp.allclose(out_big, -alpha * big, rtol=1e-6, atol=1e-6))

    print("KERNEL_OK")
</pallas_src>

<mosaic_0001>
module attributes {stable_mosaic.version = 11 : i64} {
  func.func @_neg_scale_kernel(%arg0: i32, %arg1: memref<1xf32, #tpu.memory_space<smem>>, %arg2: memref<8x256xf32, #tpu.memory_space<vmem>>, %arg3: memref<8x256xf32, #tpu.memory_space<vmem>>) attributes {dimension_semantics = [#tpu.dimension_semantics<parallel>], iteration_bounds = array<i64: 1>, scalar_prefetch = 0 : i64, scratch_operands = 0 : i64, tpu.core_type = #tpu.core_type<tc>, window_params = [{transform_indices = @transform_0, window_bounds = array<i64: 1>}, {transform_indices = @transform_1, window_bounds = array<i64: 8, 256>}, {transform_indices = @transform_2, window_bounds = array<i64: 8, 256>}]} {
    %c0 = arith.constant 0 : index
    %0 = memref.load %arg1[%c0] : memref<1xf32, #tpu.memory_space<smem>>
    %cst = arith.constant 0.000000e+00 : f32
    %1 = arith.subf %cst, %0 : f32
    %c0_0 = arith.constant 0 : index
    %c0_1 = arith.constant 0 : index
    %2 = vector.load %arg2[%c0_0, %c0_1] : memref<8x256xf32, #tpu.memory_space<vmem>>, vector<8x256xf32>
    %3 = vector.broadcast %1 : f32 to vector<8x256xf32>
    %4 = arith.mulf %2, %3 : vector<8x256xf32>
    %c0_2 = arith.constant 0 : index
    %c0_3 = arith.constant 0 : index
    %5 = vector.load %arg3[%c0_2, %c0_3] : memref<8x256xf32, #tpu.memory_space<vmem>>, vector<8x256xf32>
    tpu.vector_store %arg3[%c0_2, %c0_3], %4 {strides = array<i32>} : memref<8x256xf32, #tpu.memory_space<vmem>>, vector<8x256xf32>,
    return
  }
  func.func @transform_0(%arg0: i32) -> i32 {
    %c0_i32 = arith.constant 0 : i32
    %c0_i32_0 = arith.constant 0 : i32
    return %c0_i32 : i32
  }
  func.func @transform_1(%arg0: i32) -> (i32, i32) {
    %c0_i32 = arith.constant 0 : i32
    %c0_i32_0 = arith.constant 0 : i32
    return %arg0, %c0_i32 : i32, i32
  }
  func.func @transform_2(%arg0: i32) -> (i32, i32) {
    %c0_i32 = arith.constant 0 : i32
    %c0_i32_0 = arith.constant 0 : i32
    return %arg0, %c0_i32 : i32, i32
  }
}

</mosaic_0001>

<llo_original>
// kernel: tpu_custom_call.1
$region0: #{tpu_custom_call.1}
  #allocation0 [shape = 'u32[]', space=smem, size = 0x4, offset = 0x4, fixed_abs, tag = 'smem constant byte address 0x4 - core index']
  #allocation1 [shape = 'u32[144,128]{1,0:T(1,128)}', space=vmem, size = 0x12000, scoped, tag = 'internal scratch']
  #allocation2 [shape = 'f32[1]{0:T(128)S(6)}', space=smem, size = 0x200, scoped, tag = 'scoped memory for tpu_custom_call.1']
  %s0 = inlined_call_operand.<no memory space> [shape: f32[1], index: 0, kind: input, shape index: {}]
  %s1 = inlined_call_operand.hbm [shape: f32[8,256], index: 1, kind: input, shape index: {}, may-alias: {1,2}]
  %s2 = inlined_call_operand.hbm [shape: f32[8,256], index: 2, kind: output, shape index: {}, may-alias: {1,2}]
  %s3 = sld [smem:[#allocation0]]
  $region22: #{tpu_custom_call.1} parent=0
    _
  %s5 = ssub.s32 1, %s3
  %s6 = scalar_select 0, %s5, %s3
  %7 = sst [smem:[#allocation2]] %s0
  $region1: #{tpu_custom_call.1} parent=0
    #allocation3 [shape = 'u8[8192]{0}', space=vmem, size = 0x2000, scoped, tag = 'input window, operand 1, single buffered']
    #allocation4 [shape = 's32[1]{0}', space=sflag, size = 0x4, scoped, tag = 'scoped memory for tpu_custom_call.1']
    #allocation5 [shape = 's32[1]{0}', space=sflag, size = 0x4, scoped, tag = 'scoped memory for tpu_custom_call.1']
    #allocation6 [shape = 'u8[8192]{0}', space=vmem, size = 0x2000, scoped, tag = 'output window, operand 0, single buffered']
    %8 = vsyncpa [#allocation4], 0
    %9 = vsyncpa [#allocation5], 0
    // Predicated region
    $region2: #{tpu_custom_call.1} parent=1 // pred_check
      _
    $region3: #{tpu_custom_call.1} parent=1 // pred_check_branch
      %11 = sbr.rel (0) target = $region5
    $region4: #{tpu_custom_call.1} parent=1 // pred_region
      _
    $region5: #{tpu_custom_call.1} parent=1 // pred_fallthru
      _
    // Predicated region
    $region6: #{tpu_custom_call.1} parent=1 // pred_check
      _
    $region7: #{tpu_custom_call.1} parent=1 // pred_check_branch
      %13 = sbr.rel (0) target = $region9
    $region8: #{tpu_custom_call.1} parent=1 // pred_region
      %s15 = ssub.s32 256, 256
      %16 = vsyncadd [#allocation4], %s15
      %s18 = sshll.u32 [#allocation3], 4
      %s19 = int_to_ptr.vmem [resolvable:$true] %s18
      %21 = dma.hbm_to_vmem [thread:$0]  %s1, 256, %s19, [#allocation4]
    $region9: #{tpu_custom_call.1} parent=1 // pred_fallthru
      _
    // Predicated region
    $region10: #{tpu_custom_call.1} parent=1 // pred_check
      _
    $region11: #{tpu_custom_call.1} parent=1 // pred_check_branch
      %23 = sbr.rel (0) target = $region13
    $region12: #{tpu_custom_call.1} parent=1 // pred_region
      %24 = dma.done [#allocation4], 256
    $region13: #{tpu_custom_call.1} parent=1 // pred_fallthru
      _
    %s25 = sld [smem:[#allocation2]]
    %s26 = ssub.f32 0.0, %s25
    %v27 = vld [vmem:[#allocation3] sm:$0xff]
    %v28 = vld [vmem:[#allocation3 + $0x8] sm:$0xff]
    %v29 = vstv %s26
    %v30 = vmul.f32 %v27, %v29
    %v31 = vmul.f32 %v28, %v29
    %32 = vst [vmem:[#allocation6] sm:$0xff] %v30
    %33 = vst [vmem:[#allocation6 + $0x8] sm:$0xff] %v31
    // Predicated region
    $region14: #{tpu_custom_call.1} parent=1 // pred_check
      _
    $region15: #{tpu_custom_call.1} parent=1 // pred_check_branch
      %35 = sbr.rel (0) target = $region17
    $region16: #{tpu_custom_call.1} parent=1 // pred_region
      %s37 = ssub.s32 256, 256
      %38 = vsyncadd [#allocation5], %s37
      %s40 = sshll.u32 [#allocation6], 4
      %s41 = int_to_ptr.vmem [resolvable:$true] %s40
      %43 = dma.vmem_to_hbm [thread:$0]  %s41, 256, %s2, [#allocation5]
    $region17: #{tpu_custom_call.1} parent=1 // pred_fallthru
      _
    // Predicated region
    $region18: #{tpu_custom_call.1} parent=1 // pred_check
      _
    $region19: #{tpu_custom_call.1} parent=1 // pred_check_branch
      %45 = sbr.rel (0) target = $region21
    $region20: #{tpu_custom_call.1} parent=1 // pred_region
      %46 = dma.done [#allocation5], 256
    $region21: #{tpu_custom_call.1} parent=1 // pred_fallthru
      _
    %47 = vsyncpa [#allocation4], 1
    %48 = vsyncpa [#allocation5], 1

</llo_original>
